<compile_context>
chip_gen: v7x
topology: tpu7x:2x2x1
jax: 0.10.0
libtpu: 0.0.40
codegen_flags: <defaults>
</compile_context>

<pallas_src>
import math

import jax
import jax.numpy as jnp
from jax.experimental import pallas as pl
from jax.experimental.pallas import tpu as pltpu

_LANE = 128
_MAX_W = 8192                                  # widest lane dim tried (multiple of 128)
_BLOCK_TARGET_BYTES = 8 * 1024 * 1024          # ~8 MiB per grid block (4x = 32 MiB VMEM)
_SINGLE_BLOCK_MAX_BYTES = 8 * 1024 * 1024      # whole-array-in-one-block threshold
_SMALL_1N_MAX_BYTES = 1 * 1024 * 1024          # (1, n) fallback only for small unaligned sizes
_RAGGED_CHUNK_BYTES = 1 * 1024 * 1024          # manual-DMA chunk for large unaligned sizes
_VMEM_LIMIT_BYTES = 40 * 1024 * 1024           # explicit scoped-VMEM budget


def _copy_kernel(x_ref, o_ref):
    # Straight VMEM tile copy; the reshape itself is a no-op on data order.
    o_ref[...] = x_ref[...]


def _whole_block_copy(x2d):
    """Copy a small 2-D array as a single block (no grid, no padding)."""
    return pl.pallas_call(
        _copy_kernel,
        out_shape=jax.ShapeDtypeStruct(x2d.shape, x2d.dtype),
        compiler_params=pltpu.CompilerParams(vmem_limit_bytes=_VMEM_LIMIT_BYTES),
    )(x2d)


def _tiled_copy(x2d, block_rows):
    """Copy a (rows, W) array with a 1-D pl.cdiv grid of (block_rows, W) blocks.

    block_rows need not divide rows: the partial last block is clipped by the
    Pallas pipeline, so no padding / concatenate pass is ever needed.
    """
    rows, w = x2d.shape
    grid = (pl.cdiv(rows, block_rows),)
    return pl.pallas_call(
        _copy_kernel,
        out_shape=jax.ShapeDtypeStruct((rows, w), x2d.dtype),
        grid_spec=pltpu.PrefetchScalarGridSpec(
            num_scalar_prefetch=0,
            grid=grid,
            in_specs=[pl.BlockSpec((block_rows, w), lambda i: (i, 0))],
            out_specs=pl.BlockSpec((block_rows, w), lambda i: (i, 0)),
        ),
        compiler_params=pltpu.CompilerParams(
            # "parallel" lets v7x's two TensorCores split the copy
            # (no-op on v5e/v6e's single core).
            dimension_semantics=("parallel",),
            vmem_limit_bytes=_VMEM_LIMIT_BYTES,
        ),
    )(x2d)


def _widest_lane_dim(n):
    """Largest multiple of 128 (<= _MAX_W) dividing n; 0 if none exists."""
    best = 0
    w = _LANE
    limit = min(n, _MAX_W)
    while w <= limit:
        if n % w == 0:
            best = w
        w += _LANE
    return best


def _choose_block_rows(rows, w, itemsize):
    """Pick block_rows (multiple of 8) near the ~8 MiB target.

    Also clamps so the grid has >= ~4 steps, keeping both v7x TensorCores busy
    and balanced.  4 x block <= 32 MiB, comfortably under v7x's 64 MiB VMEM.
    """
    target = max(8, (_BLOCK_TARGET_BYTES // (w * itemsize)) // 8 * 8)
    quarter = max(8, (rows // 4) // 8 * 8)
    return min(target, quarter)


def _ragged_flat_copy(flat):
    """One-kernel copy of a flat array whose length is not a multiple of 128.

    The bulk is moved in fixed-size chunks (HBM -> VMEM -> HBM via explicit
    DMAs on raw pl.ANY refs); the <chunk remainder is copied by a small DMA on
    the last grid step.  No padding and no concatenate pass, and nothing close
    to a whole-array VMEM residency, so large unaligned sizes cannot OOM.
    """
    n = int(flat.shape[0])
    itemsize = flat.dtype.itemsize
    granule = _LANE * 8
    chunk = max(granule, (_RAGGED_CHUNK_BYTES // itemsize) // granule * granule)
    num_chunks = n // chunk
    tail = n - num_chunks * chunk
    tail_start = num_chunks * chunk

    def kernel(x_hbm, o_hbm, buf, tail_buf, sem):
        # TODO(synk): double-buffer these DMAs; low priority since the copy is
        # purely HBM-bandwidth bound and reads/writes share the same interface.
        i = pl.program_id(0)
        start = pl.multiple_of(i * chunk, chunk)
        cp_in = pltpu.make_async_copy(x_hbm.at[pl.ds(start, chunk)], buf, sem)
        cp_in.start()
        cp_in.wait()
        cp_out = pltpu.make_async_copy(buf, o_hbm.at[pl.ds(start, chunk)], sem)
        cp_out.start()
        cp_out.wait()
        if tail > 0:
            @pl.when(i == pl.num_programs(0) - 1)
            def _():
                t_in = pltpu.make_async_copy(
                    x_hbm.at[pl.ds(tail_start, tail)], tail_buf, sem)
                t_in.start()
                t_in.wait()
                t_out = pltpu.make_async_copy(
                    tail_buf, o_hbm.at[pl.ds(tail_start, tail)], sem)
                t_out.start()
                t_out.wait()

    return pl.pallas_call(
        kernel,
        out_shape=jax.ShapeDtypeStruct((n,), flat.dtype),
        grid_spec=pltpu.PrefetchScalarGridSpec(
            num_scalar_prefetch=0,
            grid=(num_chunks,),
            in_specs=[pl.BlockSpec(memory_space=pl.ANY)],
            out_specs=pl.BlockSpec(memory_space=pl.ANY),
            scratch_shapes=[
                pltpu.VMEM((chunk,), flat.dtype),
                pltpu.VMEM((max(tail, 1),), flat.dtype),
                pltpu.SemaphoreType.DMA(()),
            ],
        ),
        compiler_params=pltpu.CompilerParams(
            dimension_semantics=("arbitrary",),
            vmem_limit_bytes=_VMEM_LIMIT_BYTES,
        ),
    )(flat)


def _pallas_materialize_flat(flat):
    """Copy a flat 1-D array through Pallas, preserving element order."""
    n = int(flat.shape[0])
    itemsize = flat.dtype.itemsize
    nbytes = n * itemsize
    w = _widest_lane_dim(n)

    if w > 0:
        # Lane-dense 2-D layout: last dim a multiple of 128 (up to 8192).
        rows = n // w
        x2d = flat.reshape(rows, w)
        if nbytes <= _SINGLE_BLOCK_MAX_BYTES:
            return _whole_block_copy(x2d).reshape(-1)
        block_rows = _choose_block_rows(rows, w, itemsize)
        return _tiled_copy(x2d, block_rows).reshape(-1)

    # Flat length not a multiple of 128.
    if nbytes <= _SMALL_1N_MAX_BYTES:
        # Tiny arrays: single (1, n) block (lane-masked stores, negligible).
        return _whole_block_copy(flat.reshape(1, n)).reshape(-1)
    # Large unaligned arrays: chunked manual-DMA copy (never a (1, n) block).
    return _ragged_flat_copy(flat)


def view_forward(x, dim, shape, force_materialize=False):
    """Equivalent of View(dim, shape).forward(x)."""
    in_shape = list(x.shape)
    new_shape = tuple(in_shape[:dim]) + tuple(shape) + tuple(in_shape[dim + 1:])
    assert math.prod(in_shape) == math.prod(new_shape), "View: element count mismatch"

    if not force_materialize:
        # torch .view on contiguous data is pure metadata: zero bytes moved.
        return x.reshape(new_shape)

    flat = x.reshape(-1)
    return _pallas_materialize_flat(flat).reshape(new_shape)


if __name__ == "__main__":
    key = jax.random.PRNGKey(0)
    k1, k2, k3, k4 = jax.random.split(key, 4)

    # Test 1: small NCHW tensor, split channel dim (dim=1, 4 -> (2, 2)).
    x1 = jax.random.normal(k1, (2, 4, 16, 16), dtype=jnp.float32)
    out_meta = view_forward(x1, 1, (2, 2))                           # default: metadata only
    out_mat = view_forward(x1, 1, (2, 2), force_materialize=True)    # Pallas single-block copy
    out_meta, out_mat = jax.block_until_ready((out_meta, out_mat))
    ref1 = x1.reshape(2, 2, 2, 16, 16)
    assert out_meta.shape == ref1.shape and out_mat.shape == ref1.shape
    assert out_mat.dtype == x1.dtype
    assert bool(jnp.all(out_meta == ref1)), "metadata path mismatch"
    assert bool(jnp.all(out_mat == ref1)), "materialize path mismatch"

    # Test 2: 8 MiB tensor -> single whole-block lane-dense copy.
    x2 = jax.random.normal(k2, (2, 8, 512, 256), dtype=jnp.float32)
    out2 = view_forward(x2, 2, (2, 256), force_materialize=True)
    out2 = jax.block_until_ready(out2)
    ref2 = x2.reshape(2, 8, 2, 256, 256)
    assert out2.shape == ref2.shape and bool(jnp.all(out2 == ref2)), "whole-block path mismatch"

    # Test 3: odd size (flat length not a multiple of 128) through the kernel.
    x3 = jax.random.normal(k3, (3, 5, 7), dtype=jnp.float32)
    out3 = view_forward(x3, 1, (5, 1), force_materialize=True)
    out3 = jax.block_until_ready(out3)
    ref3 = x3.reshape(3, 5, 1, 7)
    assert out3.shape == ref3.shape and bool(jnp.all(out3 == ref3)), "odd-size path mismatch"

    # Test 4: ~12 MiB tensor whose row count (375) is not a multiple of the
    # block rows -> exercises the tiled pl.cdiv grid with a partial last block
    # (the path that replaced the old prefix/tail + concatenate fallback).
    x4 = jax.random.normal(k4, (3, 1000, 1024), dtype=jnp.float32)
    out4 = view_forward(x4, 2, (2, 512), force_materialize=True)
    out4 = jax.block_until_ready(out4)
    ref4 = x4.reshape(3, 1000, 2, 512)
    assert out4.shape == ref4.shape and bool(jnp.all(out4 == ref4)), "tiled/partial path mismatch"

    print("KERNEL_OK")
</pallas_src>

<mosaic_0001>
module attributes {stable_mosaic.version = 11 : i64} {
  func.func @_copy_kernel(%arg0: memref<1x2048xf32, #tpu.memory_space<vmem>>, %arg1: memref<1x2048xf32, #tpu.memory_space<vmem>>) attributes {dimension_semantics = [], scalar_prefetch = 0 : i64, scratch_operands = 0 : i64, tpu.core_type = #tpu.core_type<tc>} {
    %c0 = arith.constant 0 : index
    %c0_0 = arith.constant 0 : index
    %0 = vector.load %arg0[%c0, %c0_0] : memref<1x2048xf32, #tpu.memory_space<vmem>>, vector<1x2048xf32>
    %c0_1 = arith.constant 0 : index
    %c0_2 = arith.constant 0 : index
    %1 = vector.load %arg1[%c0_1, %c0_2] : memref<1x2048xf32, #tpu.memory_space<vmem>>, vector<1x2048xf32>
    tpu.vector_store %arg1[%c0_1, %c0_2], %0 {strides = array<i32>} : memref<1x2048xf32, #tpu.memory_space<vmem>>, vector<1x2048xf32>,
    return
  }
}

</mosaic_0001>

<llo_original>
// kernel: tpu_custom_call.1
$region0: #{tpu_custom_call.1}
  #allocation0 [shape = 'u32[]', space=smem, size = 0x4, offset = 0x4, fixed_abs, tag = 'smem constant byte address 0x4 - core index']
  #allocation1 [shape = 'u32[144,128]{1,0:T(1,128)}', space=vmem, size = 0x12000, scoped, tag = 'internal scratch']
  %s0 = inlined_call_operand.hbm [shape: f32[1,2048], index: 0, kind: input, shape index: {}]
  %s1 = inlined_call_operand.hbm [shape: f32[1,2048], index: 1, kind: output, shape index: {}]
  %s2 = sld [smem:[#allocation0]]
  $region18: #{tpu_custom_call.1} parent=0
    _
  %s4 = ssub.s32 1, %s2
  %s5 = scalar_select 0, %s4, %s2
  $region1: #{tpu_custom_call.1} parent=0
    #allocation2 [shape = 'u8[8192]{0}', space=vmem, size = 0x2000, scoped, tag = 'input window, operand 0, single buffered']
    #allocation3 [shape = 's32[1]{0}', space=sflag, size = 0x4, scoped, tag = 'scoped memory for tpu_custom_call.1']
    #allocation4 [shape = 's32[1]{0}', space=sflag, size = 0x4, scoped, tag = 'scoped memory for tpu_custom_call.1']
    #allocation5 [shape = 'u8[8192]{0}', space=vmem, size = 0x2000, scoped, tag = 'output window, operand 0, single buffered']
    %6 = vsyncpa [#allocation3], 0
    %7 = vsyncpa [#allocation4], 0
    // Predicated region
    $region2: #{tpu_custom_call.1} parent=1 // pred_check
      _
    $region3: #{tpu_custom_call.1} parent=1 // pred_check_branch
      %9 = sbr.rel (0) target = $region5
    $region4: #{tpu_custom_call.1} parent=1 // pred_region
      %s11 = ssub.s32 256, 256
      %12 = vsyncadd [#allocation3], %s11
      %s14 = sshll.u32 [#allocation2], 4
      %s15 = int_to_ptr.vmem [resolvable:$true] %s14
      %17 = dma.hbm_to_vmem [thread:$0]  %s0, 256, %s15, [#allocation3]
    $region5: #{tpu_custom_call.1} parent=1 // pred_fallthru
      _
    // Predicated region
    $region6: #{tpu_custom_call.1} parent=1 // pred_check
      _
    $region7: #{tpu_custom_call.1} parent=1 // pred_check_branch
      %19 = sbr.rel (0) target = $region9
    $region8: #{tpu_custom_call.1} parent=1 // pred_region
      %20 = dma.done [#allocation3], 256
    $region9: #{tpu_custom_call.1} parent=1 // pred_fallthru
      _
    %v21 = vld [vmem:[#allocation2] sm:$0xff]
    %v22 = vld [vmem:[#allocation2 + $0x8] sm:$0xff]
    %23 = vst [vmem:[#allocation5] sm:$0xff] %v21
    %24 = vst [vmem:[#allocation5 + $0x8] sm:$0xff] %v22
    // Predicated region
    $region10: #{tpu_custom_call.1} parent=1 // pred_check
      _
    $region11: #{tpu_custom_call.1} parent=1 // pred_check_branch
      %26 = sbr.rel (0) target = $region13
    $region12: #{tpu_custom_call.1} parent=1 // pred_region
      %s28 = ssub.s32 256, 256
      %29 = vsyncadd [#allocation4], %s28
      %s31 = sshll.u32 [#allocation5], 4
      %s32 = int_to_ptr.vmem [resolvable:$true] %s31
      %34 = dma.vmem_to_hbm [thread:$0]  %s32, 256, %s1, [#allocation4]
    $region13: #{tpu_custom_call.1} parent=1 // pred_fallthru
      _
    // Predicated region
    $region14: #{tpu_custom_call.1} parent=1 // pred_check
      _
    $region15: #{tpu_custom_call.1} parent=1 // pred_check_branch
      %36 = sbr.rel (0) target = $region17
    $region16: #{tpu_custom_call.1} parent=1 // pred_region
      %37 = dma.done [#allocation4], 256
    $region17: #{tpu_custom_call.1} parent=1 // pred_fallthru
      _
    %38 = vsyncpa [#allocation3], 1
    %39 = vsyncpa [#allocation4], 1

</llo_original>
